<compile_context>
chip_gen: v6e
topology: v6e:2x2x1
jax: 0.10.0
libtpu: 0.0.40
codegen_flags: <defaults>
</compile_context>

<pallas_src>
import jax
import jax.numpy as jnp
from jax.experimental import pallas as pl
from jax.experimental.pallas import tpu as pltpu

IN_DIM = 1
HIDDEN = 20
OUT_DIM = 1

# Flat SMEM parameter layout: [w1(0:20), b1(20:40), w2(40:60), b2(60)], padded to 64.
PARAM_LEN = 64

# Rows per register-resident chunk: (16, 512) f32 = 8 vregs per intermediate.
ROW_CHUNK = 16


def _round_up(a, m):
    return ((a + m - 1) // m) * m


def mlp_kernel(params_ref, x_ref, o_ref):
    """VPU-only fused 1->20->1 MLP on a lane-dense (block_rows, lanes) tile.

    NOTE: intentionally NOT reformulated as MXU matmuls -- the K=1 and K=20
    contractions would be MXU-ingest limited (~16 useful elems/cycle) versus
    ~100 elems/cycle on the 4-slot VALU path.  Keep the VPU formulation.
    """
    cdtype = x_ref.dtype

    # Hoist all 61 parameter scalars (SMEM scalar loads) once per grid step,
    # not once per row chunk.
    w1 = [params_ref[h].astype(cdtype) for h in range(HIDDEN)]
    b1 = [params_ref[HIDDEN + h].astype(cdtype) for h in range(HIDDEN)]
    w2 = [params_ref[2 * HIDDEN + h].astype(cdtype) for h in range(HIDDEN)]
    b2 = params_ref[3 * HIDDEN].astype(cdtype)

    block_rows = x_ref.shape[0]
    row_chunk = min(ROW_CHUNK, block_rows)
    n_chunks = block_rows // row_chunk
    half = HIDDEN // 2

    def chunk_body(r, carry):
        row = pl.multiple_of(r * row_chunk, row_chunk)
        x = x_ref[pl.ds(row, row_chunk), :]
        # Two passes of 10 hidden units with two partial accumulators:
        # bounds the live set (scalar splats + intermediates) and adds ILP.
        acc0 = jnp.zeros_like(x)
        for h in range(half):
            acc0 = acc0 + w2[h] * jnp.maximum(x * w1[h] + b1[h], 0.0)
        acc1 = jnp.zeros_like(x)
        for h in range(half, HIDDEN):
            acc1 = acc1 + w2[h] * jnp.maximum(x * w1[h] + b1[h], 0.0)
        o_ref[pl.ds(row, row_chunk), :] = (acc0 + acc1 + b2).astype(o_ref.dtype)
        return carry

    # Register-resident inner loop over row chunks; modest unroll gives the
    # LLO scheduler visibility without blowing up code size.
    jax.lax.fori_loop(0, n_chunks, chunk_body, None, unroll=min(n_chunks, 8))


def net_forward(x, w1, b1, w2, b2, *, lanes=512, block_rows=1024,
                compute_dtype=jnp.float32):
    """x: (N, 1) f32.  Returns (N, 1) in `compute_dtype`.  Arbitrary N via padding.

    compute_dtype=jnp.bfloat16 is the v6e/v7x packed-VPU path (looser accuracy);
    keep f32 on v5e (no bf16 VALU there).
    """
    assert lanes % 128 == 0 and lanes >= 128
    n = x.shape[0]

    # Pack the 61 parameters into one flat f32 SMEM array (single small copy).
    params = jnp.concatenate([
        w1.reshape(-1).astype(jnp.float32),
        b1.reshape(-1).astype(jnp.float32),
        w2.reshape(-1).astype(jnp.float32),
        b2.reshape(-1).astype(jnp.float32),
        jnp.zeros((PARAM_LEN - 3 * HIDDEN - OUT_DIM,), jnp.float32),
    ])

    # Lane-dense reshape of the batch: (N,1) -> (rows, lanes), zero-padded.
    rows_needed = _round_up(max(pl.cdiv(n, lanes), 1), ROW_CHUNK)
    block_rows = max(ROW_CHUNK, _round_up(min(block_rows, rows_needed), ROW_CHUNK))
    # Megacore (v7x): keep >= 2 grid steps when there is enough work for 2 cores.
    if rows_needed // block_rows < 2 and rows_needed >= 2 * ROW_CHUNK:
        block_rows = _round_up(pl.cdiv(rows_needed, 2), ROW_CHUNK)
    rows = _round_up(rows_needed, block_rows)
    padded_n = rows * lanes

    # Single pad op (no zeros + dynamic_update_slice extra HBM pass).
    xf = jnp.pad(x.reshape(-1).astype(compute_dtype), (0, padded_n - n))
    x2 = xf.reshape(rows, lanes)

    grid = (rows // block_rows,)
    y2 = pl.pallas_call(
        mlp_kernel,
        out_shape=jax.ShapeDtypeStruct((rows, lanes), compute_dtype),
        grid_spec=pltpu.PrefetchScalarGridSpec(
            num_scalar_prefetch=0,
            grid=grid,
            in_specs=[
                # Whole 64-float parameter table lives in SMEM (scalar reads).
                pl.BlockSpec(memory_space=pltpu.MemorySpace.SMEM),
                # Lane-dense batch tiles; default double buffering is enough
                # (kernel is VALU-bound ~3-5x over HBM on all generations).
                pl.BlockSpec((block_rows, lanes), lambda i: (i, 0)),
            ],
            out_specs=pl.BlockSpec((block_rows, lanes), lambda i: (i, 0)),
        ),
        compiler_params=pltpu.CompilerParams(
            # Batch axis is embarrassingly parallel -> megacore sharding on v7x.
            dimension_semantics=("parallel",)),
    )(params, x2)

    # Drop padding and restore the (N, 1) feature-last shape.
    # (Callers that can consume the lane-dense (rows, lanes) slab directly
    # should do so to skip this extra HBM pass.)
    return y2.reshape(-1)[:n].reshape(n, OUT_DIM)


def init_params(key):
    """Deterministic init mirroring PyTorch Linear default U[-1/sqrt(fan_in), 1/sqrt(fan_in)]."""
    k1, k2, k3, k4 = jax.random.split(key, 4)
    bound1 = 1.0 / (IN_DIM ** 0.5)
    bound2 = 1.0 / (HIDDEN ** 0.5)
    # Stored as [in, out] so y = x @ W (PyTorch stores [out, in]).
    w1 = jax.random.uniform(k1, (IN_DIM, HIDDEN), jnp.float32, -bound1, bound1)
    b1 = jax.random.uniform(k2, (1, HIDDEN), jnp.float32, -bound1, bound1)
    w2 = jax.random.uniform(k3, (HIDDEN, OUT_DIM), jnp.float32, -bound2, bound2)
    b2 = jax.random.uniform(k4, (1, OUT_DIM), jnp.float32, -bound2, bound2)
    return w1, b1, w2, b2


if __name__ == "__main__":
    key = jax.random.PRNGKey(0)
    w1, b1, w2, b2 = init_params(key)

    def reference(xv):
        h_ref = jnp.maximum(xv @ w1 + b1, 0.0)
        return h_ref @ w2 + b2

    # Mirror the script's input: x = unsqueeze(linspace(-1, 1, 1000), dim=1).
    N = 1000
    x = jnp.linspace(-1.0, 1.0, N, dtype=jnp.float32).reshape(N, 1)

    # f32 path (strict check).
    y = jax.block_until_ready(net_forward(x, w1, b1, w2, b2))
    y_ref = reference(x)
    assert y.shape == (N, OUT_DIM)
    assert jnp.allclose(y, y_ref, atol=1e-5, rtol=1e-5)

    # Larger batch to exercise grid >= 2 steps and the inner chunk loop.
    N2 = 50_000
    x2 = jnp.linspace(-1.0, 1.0, N2, dtype=jnp.float32).reshape(N2, 1)
    y2 = jax.block_until_ready(net_forward(x2, w1, b1, w2, b2))
    assert y2.shape == (N2, OUT_DIM)
    assert jnp.allclose(y2, reference(x2), atol=1e-5, rtol=1e-5)

    # bf16 compute/IO path (v6e/v7x option) -- loose sanity tolerance.
    y_bf = jax.block_until_ready(
        net_forward(x, w1, b1, w2, b2, compute_dtype=jnp.bfloat16))
    assert y_bf.shape == (N, OUT_DIM)
    assert jnp.allclose(y_bf.astype(jnp.float32), y_ref, atol=1e-1, rtol=1e-1)

    print("KERNEL_OK")
</pallas_src>

<mosaic_0001>
module attributes {stable_mosaic.version = 11 : i64} {
  func.func @mlp_kernel(%arg0: i32, %arg1: memref<64xf32, #tpu.memory_space<smem>>, %arg2: memref<16x512xf32, #tpu.memory_space<vmem>>, %arg3: memref<16x512xf32, #tpu.memory_space<vmem>>) attributes {dimension_semantics = [#tpu.dimension_semantics<parallel>], iteration_bounds = array<i64: 1>, scalar_prefetch = 0 : i64, scratch_operands = 0 : i64, tpu.core_type = #tpu.core_type<tc>, window_params = [{transform_indices = @transform_0, window_bounds = array<i64: 64>}, {transform_indices = @transform_1, window_bounds = array<i64: 16, 512>}, {transform_indices = @transform_2, window_bounds = array<i64: 16, 512>}]} {
    %c0 = arith.constant 0 : index
    %0 = memref.load %arg1[%c0] : memref<64xf32, #tpu.memory_space<smem>>
    %c1 = arith.constant 1 : index
    %1 = memref.load %arg1[%c1] : memref<64xf32, #tpu.memory_space<smem>>
    %c2 = arith.constant 2 : index
    %2 = memref.load %arg1[%c2] : memref<64xf32, #tpu.memory_space<smem>>
    %c3 = arith.constant 3 : index
    %3 = memref.load %arg1[%c3] : memref<64xf32, #tpu.memory_space<smem>>
    %c4 = arith.constant 4 : index
    %4 = memref.load %arg1[%c4] : memref<64xf32, #tpu.memory_space<smem>>
    %c5 = arith.constant 5 : index
    %5 = memref.load %arg1[%c5] : memref<64xf32, #tpu.memory_space<smem>>
    %c6 = arith.constant 6 : index
    %6 = memref.load %arg1[%c6] : memref<64xf32, #tpu.memory_space<smem>>
    %c7 = arith.constant 7 : index
    %7 = memref.load %arg1[%c7] : memref<64xf32, #tpu.memory_space<smem>>
    %c8 = arith.constant 8 : index
    %8 = memref.load %arg1[%c8] : memref<64xf32, #tpu.memory_space<smem>>
    %c9 = arith.constant 9 : index
    %9 = memref.load %arg1[%c9] : memref<64xf32, #tpu.memory_space<smem>>
    %c10 = arith.constant 10 : index
    %10 = memref.load %arg1[%c10] : memref<64xf32, #tpu.memory_space<smem>>
    %c11 = arith.constant 11 : index
    %11 = memref.load %arg1[%c11] : memref<64xf32, #tpu.memory_space<smem>>
    %c12 = arith.constant 12 : index
    %12 = memref.load %arg1[%c12] : memref<64xf32, #tpu.memory_space<smem>>
    %c13 = arith.constant 13 : index
    %13 = memref.load %arg1[%c13] : memref<64xf32, #tpu.memory_space<smem>>
    %c14 = arith.constant 14 : index
    %14 = memref.load %arg1[%c14] : memref<64xf32, #tpu.memory_space<smem>>
    %c15 = arith.constant 15 : index
    %15 = memref.load %arg1[%c15] : memref<64xf32, #tpu.memory_space<smem>>
    %c16 = arith.constant 16 : index
    %16 = memref.load %arg1[%c16] : memref<64xf32, #tpu.memory_space<smem>>
    %c17 = arith.constant 17 : index
    %17 = memref.load %arg1[%c17] : memref<64xf32, #tpu.memory_space<smem>>
    %c18 = arith.constant 18 : index
    %18 = memref.load %arg1[%c18] : memref<64xf32, #tpu.memory_space<smem>>
    %c19 = arith.constant 19 : index
    %19 = memref.load %arg1[%c19] : memref<64xf32, #tpu.memory_space<smem>>
    %c20 = arith.constant 20 : index
    %20 = memref.load %arg1[%c20] : memref<64xf32, #tpu.memory_space<smem>>
    %c21 = arith.constant 21 : index
    %21 = memref.load %arg1[%c21] : memref<64xf32, #tpu.memory_space<smem>>
    %c22 = arith.constant 22 : index
    %22 = memref.load %arg1[%c22] : memref<64xf32, #tpu.memory_space<smem>>
    %c23 = arith.constant 23 : index
    %23 = memref.load %arg1[%c23] : memref<64xf32, #tpu.memory_space<smem>>
    %c24 = arith.constant 24 : index
    %24 = memref.load %arg1[%c24] : memref<64xf32, #tpu.memory_space<smem>>
    %c25 = arith.constant 25 : index
    %25 = memref.load %arg1[%c25] : memref<64xf32, #tpu.memory_space<smem>>
    %c26 = arith.constant 26 : index
    %26 = memref.load %arg1[%c26] : memref<64xf32, #tpu.memory_space<smem>>
    %c27 = arith.constant 27 : index
    %27 = memref.load %arg1[%c27] : memref<64xf32, #tpu.memory_space<smem>>
    %c28 = arith.constant 28 : index
    %28 = memref.load %arg1[%c28] : memref<64xf32, #tpu.memory_space<smem>>
    %c29 = arith.constant 29 : index
    %29 = memref.load %arg1[%c29] : memref<64xf32, #tpu.memory_space<smem>>
    %c30 = arith.constant 30 : index
    %30 = memref.load %arg1[%c30] : memref<64xf32, #tpu.memory_space<smem>>
    %c31 = arith.constant 31 : index
    %31 = memref.load %arg1[%c31] : memref<64xf32, #tpu.memory_space<smem>>
    %c32 = arith.constant 32 : index
    %32 = memref.load %arg1[%c32] : memref<64xf32, #tpu.memory_space<smem>>
    %c33 = arith.constant 33 : index
    %33 = memref.load %arg1[%c33] : memref<64xf32, #tpu.memory_space<smem>>
    %c34 = arith.constant 34 : index
    %34 = memref.load %arg1[%c34] : memref<64xf32, #tpu.memory_space<smem>>
    %c35 = arith.constant 35 : index
    %35 = memref.load %arg1[%c35] : memref<64xf32, #tpu.memory_space<smem>>
    %c36 = arith.constant 36 : index
    %36 = memref.load %arg1[%c36] : memref<64xf32, #tpu.memory_space<smem>>
    %c37 = arith.constant 37 : index
    %37 = memref.load %arg1[%c37] : memref<64xf32, #tpu.memory_space<smem>>
    %c38 = arith.constant 38 : index
    %38 = memref.load %arg1[%c38] : memref<64xf32, #tpu.memory_space<smem>>
    %c39 = arith.constant 39 : index
    %39 = memref.load %arg1[%c39] : memref<64xf32, #tpu.memory_space<smem>>
    %c40 = arith.constant 40 : index
    %40 = memref.load %arg1[%c40] : memref<64xf32, #tpu.memory_space<smem>>
    %c41 = arith.constant 41 : index
    %41 = memref.load %arg1[%c41] : memref<64xf32, #tpu.memory_space<smem>>
    %c42 = arith.constant 42 : index
    %42 = memref.load %arg1[%c42] : memref<64xf32, #tpu.memory_space<smem>>
    %c43 = arith.constant 43 : index
    %43 = memref.load %arg1[%c43] : memref<64xf32, #tpu.memory_space<smem>>
    %c44 = arith.constant 44 : index
    %44 = memref.load %arg1[%c44] : memref<64xf32, #tpu.memory_space<smem>>
    %c45 = arith.constant 45 : index
    %45 = memref.load %arg1[%c45] : memref<64xf32, #tpu.memory_space<smem>>
    %c46 = arith.constant 46 : index
    %46 = memref.load %arg1[%c46] : memref<64xf32, #tpu.memory_space<smem>>
    %c47 = arith.constant 47 : index
    %47 = memref.load %arg1[%c47] : memref<64xf32, #tpu.memory_space<smem>>
    %c48 = arith.constant 48 : index
    %48 = memref.load %arg1[%c48] : memref<64xf32, #tpu.memory_space<smem>>
    %c49 = arith.constant 49 : index
    %49 = memref.load %arg1[%c49] : memref<64xf32, #tpu.memory_space<smem>>
    %c50 = arith.constant 50 : index
    %50 = memref.load %arg1[%c50] : memref<64xf32, #tpu.memory_space<smem>>
    %c51 = arith.constant 51 : index
    %51 = memref.load %arg1[%c51] : memref<64xf32, #tpu.memory_space<smem>>
    %c52 = arith.constant 52 : index
    %52 = memref.load %arg1[%c52] : memref<64xf32, #tpu.memory_space<smem>>
    %c53 = arith.constant 53 : index
    %53 = memref.load %arg1[%c53] : memref<64xf32, #tpu.memory_space<smem>>
    %c54 = arith.constant 54 : index
    %54 = memref.load %arg1[%c54] : memref<64xf32, #tpu.memory_space<smem>>
    %c55 = arith.constant 55 : index
    %55 = memref.load %arg1[%c55] : memref<64xf32, #tpu.memory_space<smem>>
    %c56 = arith.constant 56 : index
    %56 = memref.load %arg1[%c56] : memref<64xf32, #tpu.memory_space<smem>>
    %c57 = arith.constant 57 : index
    %57 = memref.load %arg1[%c57] : memref<64xf32, #tpu.memory_space<smem>>
    %c58 = arith.constant 58 : index
    %58 = memref.load %arg1[%c58] : memref<64xf32, #tpu.memory_space<smem>>
    %c59 = arith.constant 59 : index
    %59 = memref.load %arg1[%c59] : memref<64xf32, #tpu.memory_space<smem>>
    %c60 = arith.constant 60 : index
    %60 = memref.load %arg1[%c60] : memref<64xf32, #tpu.memory_space<smem>>
    %c0_i32 = arith.constant 0 : i32
    %c16_i32 = arith.constant 16 : i32
    %61 = arith.muli %c0_i32, %c16_i32 : i32
    %62 = tpu.assume_multiple %61, 16 : i32
    %63 = arith.index_cast %62 : i32 to index
    %c0_0 = arith.constant 0 : index
    %64 = vector.load %arg2[%63, %c0_0] : memref<16x512xf32, #tpu.memory_space<vmem>>, vector<16x512xf32>
    %cst = arith.constant 0.000000e+00 : f32
    %65 = vector.broadcast %cst : f32 to vector<16x512xf32>
    %66 = vector.broadcast %0 : f32 to vector<16x512xf32>
    %67 = arith.mulf %64, %66 : vector<16x512xf32>
    %68 = vector.broadcast %20 : f32 to vector<16x512xf32>
    %69 = arith.addf %67, %68 : vector<16x512xf32>
    %cst_1 = arith.constant 0.000000e+00 : f32
    %70 = vector.broadcast %cst_1 : f32 to vector<16x512xf32>
    %71 = arith.maximumf %69, %70 : vector<16x512xf32>
    %72 = vector.broadcast %40 : f32 to vector<16x512xf32>
    %73 = arith.mulf %72, %71 : vector<16x512xf32>
    %74 = arith.addf %65, %73 : vector<16x512xf32>
    %75 = vector.broadcast %1 : f32 to vector<16x512xf32>
    %76 = arith.mulf %64, %75 : vector<16x512xf32>
    %77 = vector.broadcast %21 : f32 to vector<16x512xf32>
    %78 = arith.addf %76, %77 : vector<16x512xf32>
    %cst_2 = arith.constant 0.000000e+00 : f32
    %79 = vector.broadcast %cst_2 : f32 to vector<16x512xf32>
    %80 = arith.maximumf %78, %79 : vector<16x512xf32>
    %81 = vector.broadcast %41 : f32 to vector<16x512xf32>
    %82 = arith.mulf %81, %80 : vector<16x512xf32>
    %83 = arith.addf %74, %82 : vector<16x512xf32>
    %84 = vector.broadcast %2 : f32 to vector<16x512xf32>
    %85 = arith.mulf %64, %84 : vector<16x512xf32>
    %86 = vector.broadcast %22 : f32 to vector<16x512xf32>
    %87 = arith.addf %85, %86 : vector<16x512xf32>
    %cst_3 = arith.constant 0.000000e+00 : f32
    %88 = vector.broadcast %cst_3 : f32 to vector<16x512xf32>
    %89 = arith.maximumf %87, %88 : vector<16x512xf32>
    %90 = vector.broadcast %42 : f32 to vector<16x512xf32>
    %91 = arith.mulf %90, %89 : vector<16x512xf32>
    %92 = arith.addf %83, %91 : vector<16x512xf32>
    %93 = vector.broadcast %3 : f32 to vector<16x512xf32>
    %94 = arith.mulf %64, %93 : vector<16x512xf32>
    %95 = vector.broadcast %23 : f32 to vector<16x512xf32>
    %96 = arith.addf %94, %95 : vector<16x512xf32>
    %cst_4 = arith.constant 0.000000e+00 : f32
    %97 = vector.broadcast %cst_4 : f32 to vector<16x512xf32>
    %98 = arith.maximumf %96, %97 : vector<16x512xf32>
    %99 = vector.broadcast %43 : f32 to vector<16x512xf32>
    %100 = arith.mulf %99, %98 : vector<16x512xf32>
    %101 = arith.addf %92, %100 : vector<16x512xf32>
    %102 = vector.broadcast %4 : f32 to vector<16x512xf32>
    %103 = arith.mulf %64, %102 : vector<16x512xf32>
    %104 = vector.broadcast %24 : f32 to vector<16x512xf32>
    %105 = arith.addf %103, %104 : vector<16x512xf32>
    %cst_5 = arith.constant 0.000000e+00 : f32
    %106 = vector.broadcast %cst_5 : f32 to vector<16x512xf32>
    %107 = arith.maximumf %105, %106 : vector<16x512xf32>
    %108 = vector.broadcast %44 : f32 to vector<16x512xf32>
    %109 = arith.mulf %108, %107 : vector<16x512xf32>
    %110 = arith.addf %101, %109 : vector<16x512xf32>
    %111 = vector.broadcast %5 : f32 to vector<16x512xf32>
    %112 = arith.mulf %64, %111 : vector<16x512xf32>
    %113 = vector.broadcast %25 : f32 to vector<16x512xf32>
    %114 = arith.addf %112, %113 : vector<16x512xf32>
    %cst_6 = arith.constant 0.000000e+00 : f32
    %115 = vector.broadcast %cst_6 : f32 to vector<16x512xf32>
    %116 = arith.maximumf %114, %115 : vector<16x512xf32>
    %117 = vector.broadcast %45 : f32 to vector<16x512xf32>
    %118 = arith.mulf %117, %116 : vector<16x512xf32>
    %119 = arith.addf %110, %118 : vector<16x512xf32>
    %120 = vector.broadcast %6 : f32 to vector<16x512xf32>
    %121 = arith.mulf %64, %120 : vector<16x512xf32>
    %122 = vector.broadcast %26 : f32 to vector<16x512xf32>
    %123 = arith.addf %121, %122 : vector<16x512xf32>
    %cst_7 = arith.constant 0.000000e+00 : f32
    %124 = vector.broadcast %cst_7 : f32 to vector<16x512xf32>
    %125 = arith.maximumf %123, %124 : vector<16x512xf32>
    %126 = vector.broadcast %46 : f32 to vector<16x512xf32>
    %127 = arith.mulf %126, %125 : vector<16x512xf32>
    %128 = arith.addf %119, %127 : vector<16x512xf32>
    %129 = vector.broadcast %7 : f32 to vector<16x512xf32>
    %130 = arith.mulf %64, %129 : vector<16x512xf32>
    %131 = vector.broadcast %27 : f32 to vector<16x512xf32>
    %132 = arith.addf %130, %131 : vector<16x512xf32>
    %cst_8 = arith.constant 0.000000e+00 : f32
    %133 = vector.broadcast %cst_8 : f32 to vector<16x512xf32>
    %134 = arith.maximumf %132, %133 : vector<16x512xf32>
    %135 = vector.broadcast %47 : f32 to vector<16x512xf32>
    %136 = arith.mulf %135, %134 : vector<16x512xf32>
    %137 = arith.addf %128, %136 : vector<16x512xf32>
    %138 = vector.broadcast %8 : f32 to vector<16x512xf32>
    %139 = arith.mulf %64, %138 : vector<16x512xf32>
    %140 = vector.broadcast %28 : f32 to vector<16x512xf32>
    %141 = arith.addf %139, %140 : vector<16x512xf32>
    %cst_9 = arith.constant 0.000000e+00 : f32
    %142 = vector.broadcast %cst_9 : f32 to vector<16x512xf32>
    %143 = arith.maximumf %141, %142 : vector<16x512xf32>
    %144 = vector.broadcast %48 : f32 to vector<16x512xf32>
    %145 = arith.mulf %144, %143 : vector<16x512xf32>
    %146 = arith.addf %137, %145 : vector<16x512xf32>
    %147 = vector.broadcast %9 : f32 to vector<16x512xf32>
    %148 = arith.mulf %64, %147 : vector<16x512xf32>
    %149 = vector.broadcast %29 : f32 to vector<16x512xf32>
    %150 = arith.addf %148, %149 : vector<16x512xf32>
    %cst_10 = arith.constant 0.000000e+00 : f32
    %151 = vector.broadcast %cst_10 : f32 to vector<16x512xf32>
    %152 = arith.maximumf %150, %151 : vector<16x512xf32>
    %153 = vector.broadcast %49 : f32 to vector<16x512xf32>
    %154 = arith.mulf %153, %152 : vector<16x512xf32>
    %155 = arith.addf %146, %154 : vector<16x512xf32>
    %cst_11 = arith.constant 0.000000e+00 : f32
    %156 = vector.broadcast %cst_11 : f32 to vector<16x512xf32>
    %157 = vector.broadcast %10 : f32 to vector<16x512xf32>
    %158 = arith.mulf %64, %157 : vector<16x512xf32>
    %159 = vector.broadcast %30 : f32 to vector<16x512xf32>
    %160 = arith.addf %158, %159 : vector<16x512xf32>
    %cst_12 = arith.constant 0.000000e+00 : f32
    %161 = vector.broadcast %cst_12 : f32 to vector<16x512xf32>
    %162 = arith.maximumf %160, %161 : vector<16x512xf32>
    %163 = vector.broadcast %50 : f32 to vector<16x512xf32>
    %164 = arith.mulf %163, %162 : vector<16x512xf32>
    %165 = arith.addf %156, %164 : vector<16x512xf32>
    %166 = vector.broadcast %11 : f32 to vector<16x512xf32>
    %167 = arith.mulf %64, %166 : vector<16x512xf32>
    %168 = vector.broadcast %31 : f32 to vector<16x512xf32>
    %169 = arith.addf %167, %168 : vector<16x512xf32>
    %cst_13 = arith.constant 0.000000e+00 : f32
    %170 = vector.broadcast %cst_13 : f32 to vector<16x512xf32>
    %171 = arith.maximumf %169, %170 : vector<16x512xf32>
    %172 = vector.broadcast %51 : f32 to vector<16x512xf32>
    %173 = arith.mulf %172, %171 : vector<16x512xf32>
    %174 = arith.addf %165, %173 : vector<16x512xf32>
    %175 = vector.broadcast %12 : f32 to vector<16x512xf32>
    %176 = arith.mulf %64, %175 : vector<16x512xf32>
    %177 = vector.broadcast %32 : f32 to vector<16x512xf32>
    %178 = arith.addf %176, %177 : vector<16x512xf32>
    %cst_14 = arith.constant 0.000000e+00 : f32
    %179 = vector.broadcast %cst_14 : f32 to vector<16x512xf32>
    %180 = arith.maximumf %178, %179 : vector<16x512xf32>
    %181 = vector.broadcast %52 : f32 to vector<16x512xf32>
    %182 = arith.mulf %181, %180 : vector<16x512xf32>
    %183 = arith.addf %174, %182 : vector<16x512xf32>
    %184 = vector.broadcast %13 : f32 to vector<16x512xf32>
    %185 = arith.mulf %64, %184 : vector<16x512xf32>
    %186 = vector.broadcast %33 : f32 to vector<16x512xf32>
    %187 = arith.addf %185, %186 : vector<16x512xf32>
    %cst_15 = arith.constant 0.000000e+00 : f32
    %188 = vector.broadcast %cst_15 : f32 to vector<16x512xf32>
    %189 = arith.maximumf %187, %188 : vector<16x512xf32>
    %190 = vector.broadcast %53 : f32 to vector<16x512xf32>
    %191 = arith.mulf %190, %189 : vector<16x512xf32>
    %192 = arith.addf %183, %191 : vector<16x512xf32>
    %193 = vector.broadcast %14 : f32 to vector<16x512xf32>
    %194 = arith.mulf %64, %193 : vector<16x512xf32>
    %195 = vector.broadcast %34 : f32 to vector<16x512xf32>
    %196 = arith.addf %194, %195 : vector<16x512xf32>
    %cst_16 = arith.constant 0.000000e+00 : f32
    %197 = vector.broadcast %cst_16 : f32 to vector<16x512xf32>
    %198 = arith.maximumf %196, %197 : vector<16x512xf32>
    %199 = vector.broadcast %54 : f32 to vector<16x512xf32>
    %200 = arith.mulf %199, %198 : vector<16x512xf32>
    %201 = arith.addf %192, %200 : vector<16x512xf32>
    %202 = vector.broadcast %15 : f32 to vector<16x512xf32>
    %203 = arith.mulf %64, %202 : vector<16x512xf32>
    %204 = vector.broadcast %35 : f32 to vector<16x512xf32>
    %205 = arith.addf %203, %204 : vector<16x512xf32>
    %cst_17 = arith.constant 0.000000e+00 : f32
    %206 = vector.broadcast %cst_17 : f32 to vector<16x512xf32>
    %207 = arith.maximumf %205, %206 : vector<16x512xf32>
    %208 = vector.broadcast %55 : f32 to vector<16x512xf32>
    %209 = arith.mulf %208, %207 : vector<16x512xf32>
    %210 = arith.addf %201, %209 : vector<16x512xf32>
    %211 = vector.broadcast %16 : f32 to vector<16x512xf32>
    %212 = arith.mulf %64, %211 : vector<16x512xf32>
    %213 = vector.broadcast %36 : f32 to vector<16x512xf32>
    %214 = arith.addf %212, %213 : vector<16x512xf32>
    %cst_18 = arith.constant 0.000000e+00 : f32
    %215 = vector.broadcast %cst_18 : f32 to vector<16x512xf32>
    %216 = arith.maximumf %214, %215 : vector<16x512xf32>
    %217 = vector.broadcast %56 : f32 to vector<16x512xf32>
    %218 = arith.mulf %217, %216 : vector<16x512xf32>
    %219 = arith.addf %210, %218 : vector<16x512xf32>
    %220 = vector.broadcast %17 : f32 to vector<16x512xf32>
    %221 = arith.mulf %64, %220 : vector<16x512xf32>
    %222 = vector.broadcast %37 : f32 to vector<16x512xf32>
    %223 = arith.addf %221, %222 : vector<16x512xf32>
    %cst_19 = arith.constant 0.000000e+00 : f32
    %224 = vector.broadcast %cst_19 : f32 to vector<16x512xf32>
    %225 = arith.maximumf %223, %224 : vector<16x512xf32>
    %226 = vector.broadcast %57 : f32 to vector<16x512xf32>
    %227 = arith.mulf %226, %225 : vector<16x512xf32>
    %228 = arith.addf %219, %227 : vector<16x512xf32>
    %229 = vector.broadcast %18 : f32 to vector<16x512xf32>
    %230 = arith.mulf %64, %229 : vector<16x512xf32>
    %231 = vector.broadcast %38 : f32 to vector<16x512xf32>
    %232 = arith.addf %230, %231 : vector<16x512xf32>
    %cst_20 = arith.constant 0.000000e+00 : f32
    %233 = vector.broadcast %cst_20 : f32 to vector<16x512xf32>
    %234 = arith.maximumf %232, %233 : vector<16x512xf32>
    %235 = vector.broadcast %58 : f32 to vector<16x512xf32>
    %236 = arith.mulf %235, %234 : vector<16x512xf32>
    %237 = arith.addf %228, %236 : vector<16x512xf32>
    %238 = vector.broadcast %19 : f32 to vector<16x512xf32>
    %239 = arith.mulf %64, %238 : vector<16x512xf32>
    %240 = vector.broadcast %39 : f32 to vector<16x512xf32>
    %241 = arith.addf %239, %240 : vector<16x512xf32>
    %cst_21 = arith.constant 0.000000e+00 : f32
    %242 = vector.broadcast %cst_21 : f32 to vector<16x512xf32>
    %243 = arith.maximumf %241, %242 : vector<16x512xf32>
    %244 = vector.broadcast %59 : f32 to vector<16x512xf32>
    %245 = arith.mulf %244, %243 : vector<16x512xf32>
    %246 = arith.addf %237, %245 : vector<16x512xf32>
    %247 = arith.addf %155, %246 : vector<16x512xf32>
    %248 = vector.broadcast %60 : f32 to vector<16x512xf32>
    %249 = arith.addf %247, %248 : vector<16x512xf32>
    %250 = arith.index_cast %62 : i32 to index
    %c0_22 = arith.constant 0 : index
    %251 = vector.load %arg3[%250, %c0_22] : memref<16x512xf32, #tpu.memory_space<vmem>>, vector<16x512xf32>
    tpu.vector_store %arg3[%250, %c0_22], %249 {strides = array<i32>} : memref<16x512xf32, #tpu.memory_space<vmem>>, vector<16x512xf32>,
    %c1_i32 = arith.constant 1 : i32
    return
  }
  func.func @transform_0(%arg0: i32) -> i32 {
    %c0_i32 = arith.constant 0 : i32
    %c0_i32_0 = arith.constant 0 : i32
    return %c0_i32 : i32
  }
  func.func @transform_1(%arg0: i32) -> (i32, i32) {
    %c0_i32 = arith.constant 0 : i32
    %c0_i32_0 = arith.constant 0 : i32
    return %arg0, %c0_i32 : i32, i32
  }
  func.func @transform_2(%arg0: i32) -> (i32, i32) {
    %c0_i32 = arith.constant 0 : i32
    %c0_i32_0 = arith.constant 0 : i32
    return %arg0, %c0_i32 : i32, i32
  }
}

</mosaic_0001>

<llo_original>
// kernel: tpu_custom_call.1
$region0: #{tpu_custom_call.1}
  #allocation0 [shape = 'u32[]', space=smem, size = 0x4, offset = 0x4, fixed_abs, tag = 'smem constant byte address 0x4 - core index']
  #allocation1 [shape = 'u32[144,128]{1,0:T(1,128)}', space=vmem, size = 0x12000, scoped, tag = 'internal scratch']
  %s0 = inlined_call_operand.hbm [shape: f32[64], index: 0, kind: input, shape index: {}]
  %s1 = inlined_call_operand.hbm [shape: f32[16,512], index: 1, kind: input, shape index: {}]
  %s2 = inlined_call_operand.hbm [shape: f32[16,512], index: 2, kind: output, shape index: {}]
  %s3 = sld [smem:[#allocation0]]
  $region26: #{tpu_custom_call.1} parent=0
    _
  %s5 = ssub.s32 1, %s3
  %s6 = scalar_select 0, %s5, %s3
  $region1: #{tpu_custom_call.1} parent=0
    #allocation2 [shape = 'u8[512]{0}', space=smem, size = 0x200, scoped, tag = 'input window, operand 0, single buffered']
    #allocation3 [shape = 's32[1]{0}', space=sflag, size = 0x4, scoped, tag = 'scoped memory for tpu_custom_call.1']
    #allocation4 [shape = 's32[1]{0}', space=sflag, size = 0x4, scoped, tag = 'scoped memory for tpu_custom_call.1']
    #allocation5 [shape = 's32[1]{0}', space=sflag, size = 0x4, scoped, tag = 'scoped memory for tpu_custom_call.1']
    #allocation6 [shape = 'u8[32768]{0}', space=vmem, size = 0x8000, scoped, tag = 'input window, operand 1, single buffered']
    #allocation7 [shape = 'u8[32768]{0}', space=vmem, size = 0x8000, scoped, tag = 'output window, operand 0, single buffered']
    %7 = vsyncpa [#allocation5], 0
    %8 = vsyncpa [#allocation3], 0
    %9 = vsyncpa [#allocation4], 0
    // Predicated region
    $region2: #{tpu_custom_call.1} parent=1 // pred_check
      _
    $region3: #{tpu_custom_call.1} parent=1 // pred_check_branch
      %11 = sbr.rel (0) target = $region5
    $region4: #{tpu_custom_call.1} parent=1 // pred_region
      %s13 = ssub.s32 16, 16
      %14 = vsyncadd [#allocation5], %s13
      %17 = dma.hbm_to_smem %s0, 16, [#allocation2], [#allocation5]
    $region5: #{tpu_custom_call.1} parent=1 // pred_fallthru
      _
    // Predicated region
    $region6: #{tpu_custom_call.1} parent=1 // pred_check
      _
    $region7: #{tpu_custom_call.1} parent=1 // pred_check_branch
      %19 = sbr.rel (0) target = $region9
    $region8: #{tpu_custom_call.1} parent=1 // pred_region
      %s21 = ssub.s32 1024, 1024
      %22 = vsyncadd [#allocation3], %s21
      %s23 = sshll.u32 [#allocation6], 4
      %s24 = int_to_ptr.vmem [resolvable:$true] %s23
      %29 = dma.hbm_to_vmem [thread:$0]  %s1, 1024, %s24, [#allocation3], 512, 512, 32
    $region9: #{tpu_custom_call.1} parent=1 // pred_fallthru
      _
    // Predicated region
    $region10: #{tpu_custom_call.1} parent=1 // pred_check
      _
    $region11: #{tpu_custom_call.1} parent=1 // pred_check_branch
      %31 = sbr.rel (0) target = $region13
    $region12: #{tpu_custom_call.1} parent=1 // pred_region
      %32 = dma.done [#allocation5], 16
    $region13: #{tpu_custom_call.1} parent=1 // pred_fallthru
      _
    // Predicated region
    $region14: #{tpu_custom_call.1} parent=1 // pred_check
      _
    $region15: #{tpu_custom_call.1} parent=1 // pred_check_branch
      %34 = sbr.rel (0) target = $region17
    $region16: #{tpu_custom_call.1} parent=1 // pred_region
      %35 = dma.done [#allocation3], 1024
    $region17: #{tpu_custom_call.1} parent=1 // pred_fallthru
      _
    %36 = sfence
    %s37 = sld [smem:[#allocation2]]
    %s38 = sld [smem:[#allocation2 + $0x1]]
    %s39 = sld [smem:[#allocation2 + $0x2]]
    %s40 = sld [smem:[#allocation2 + $0x3]]
    %s41 = sld [smem:[#allocation2 + $0x4]]
    %s42 = sld [smem:[#allocation2 + $0x5]]
    %s43 = sld [smem:[#allocation2 + $0x6]]
    %s44 = sld [smem:[#allocation2 + $0x7]]
    %s45 = sld [smem:[#allocation2 + $0x8]]
    %s46 = sld [smem:[#allocation2 + $0x9]]
    %s47 = sld [smem:[#allocation2 + $0xa]]
    %s48 = sld [smem:[#allocation2 + $0xb]]
    %s49 = sld [smem:[#allocation2 + $0xc]]
    %s50 = sld [smem:[#allocation2 + $0xd]]
    %s51 = sld [smem:[#allocation2 + $0xe]]
    %s52 = sld [smem:[#allocation2 + $0xf]]
    %s53 = sld [smem:[#allocation2 + $0x10]]
    %s54 = sld [smem:[#allocation2 + $0x11]]
    %s55 = sld [smem:[#allocation2 + $0x12]]
    %s56 = sld [smem:[#allocation2 + $0x13]]
    %s57 = sld [smem:[#allocation2 + $0x14]]
    %s58 = sld [smem:[#allocation2 + $0x15]]
    %s59 = sld [smem:[#allocation2 + $0x16]]
    %s60 = sld [smem:[#allocation2 + $0x17]]
    %s61 = sld [smem:[#allocation2 + $0x18]]
    %s62 = sld [smem:[#allocation2 + $0x19]]
    %s63 = sld [smem:[#allocation2 + $0x1a]]
    %s64 = sld [smem:[#allocation2 + $0x1b]]
    %s65 = sld [smem:[#allocation2 + $0x1c]]
    %s66 = sld [smem:[#allocation2 + $0x1d]]
    %s67 = sld [smem:[#allocation2 + $0x1e]]
    %s68 = sld [smem:[#allocation2 + $0x1f]]
    %s69 = sld [smem:[#allocation2 + $0x20]]
    %s70 = sld [smem:[#allocation2 + $0x21]]
    %s71 = sld [smem:[#allocation2 + $0x22]]
    %s72 = sld [smem:[#allocation2 + $0x23]]
    %s73 = sld [smem:[#allocation2 + $0x24]]
    %s74 = sld [smem:[#allocation2 + $0x25]]
    %s75 = sld [smem:[#allocation2 + $0x26]]
    %s76 = sld [smem:[#allocation2 + $0x27]]
    %s77 = sld [smem:[#allocation2 + $0x28]]
    %s78 = sld [smem:[#allocation2 + $0x29]]
    %s79 = sld [smem:[#allocation2 + $0x2a]]
    %s80 = sld [smem:[#allocation2 + $0x2b]]
    %s81 = sld [smem:[#allocation2 + $0x2c]]
    %s82 = sld [smem:[#allocation2 + $0x2d]]
    %s83 = sld [smem:[#allocation2 + $0x2e]]
    %s84 = sld [smem:[#allocation2 + $0x2f]]
    %s85 = sld [smem:[#allocation2 + $0x30]]
    %s86 = sld [smem:[#allocation2 + $0x31]]
    %s87 = sld [smem:[#allocation2 + $0x32]]
    %s88 = sld [smem:[#allocation2 + $0x33]]
    %s89 = sld [smem:[#allocation2 + $0x34]]
    %s90 = sld [smem:[#allocation2 + $0x35]]
    %s91 = sld [smem:[#allocation2 + $0x36]]
    %s92 = sld [smem:[#allocation2 + $0x37]]
    %s93 = sld [smem:[#allocation2 + $0x38]]
    %s94 = sld [smem:[#allocation2 + $0x39]]
    %s95 = sld [smem:[#allocation2 + $0x3a]]
    %s96 = sld [smem:[#allocation2 + $0x3b]]
    %s97 = sld [smem:[#allocation2 + $0x3c]]
    %s98 = smul.u32 0, 4
    %s99 = smul.addr %s98, 8
    %s100 = scalar_lea.vmem [#allocation6], %s99
    %v101 = vld [vmem:[%s100] sm:$0xff]
    %v102 = vld [vmem:[%s100 + $0x8] sm:$0xff]
    %v103 = vld [vmem:[%s100 + $0x10] sm:$0xff]
    %v104 = vld [vmem:[%s100 + $0x18] sm:$0xff]
    %v105 = vld [vmem:[%s100 + $0x20] sm:$0xff]
    %v106 = vld [vmem:[%s100 + $0x28] sm:$0xff]
    %v107 = vld [vmem:[%s100 + $0x30] sm:$0xff]
    %v108 = vld [vmem:[%s100 + $0x38] sm:$0xff]
    %v109 = vstv %s37
    %v110 = vmul.f32 %v101, %v109
    %v111 = vmul.f32 %v102, %v109
    %v112 = vmul.f32 %v103, %v109
    %v113 = vmul.f32 %v104, %v109
    %v114 = vmul.f32 %v105, %v109
    %v115 = vmul.f32 %v106, %v109
    %v116 = vmul.f32 %v107, %v109
    %v117 = vmul.f32 %v108, %v109
    %v118 = vstv %s57
    %v119 = vadd.f32 %v110, %v118
    %v120 = vadd.f32 %v111, %v118
    %v121 = vadd.f32 %v112, %v118
    %v122 = vadd.f32 %v113, %v118
    %v123 = vadd.f32 %v114, %v118
    %v124 = vadd.f32 %v115, %v118
    %v125 = vadd.f32 %v116, %v118
    %v126 = vadd.f32 %v117, %v118
    %v127 = vmax.f32 %v119, 0.0
    %v128 = vmax.f32 %v120, 0.0
    %v129 = vmax.f32 %v121, 0.0
    %v130 = vmax.f32 %v122, 0.0
    %v131 = vmax.f32 %v123, 0.0
    %v132 = vmax.f32 %v124, 0.0
    %v133 = vmax.f32 %v125, 0.0
    %v134 = vmax.f32 %v126, 0.0
    %v135 = vstv %s77
    %v136 = vmul.f32 %v135, %v127
    %v137 = vmul.f32 %v135, %v128
    %v138 = vmul.f32 %v135, %v129
    %v139 = vmul.f32 %v135, %v130
    %v140 = vmul.f32 %v135, %v131
    %v141 = vmul.f32 %v135, %v132
    %v142 = vmul.f32 %v135, %v133
    %v143 = vmul.f32 %v135, %v134
    %v144 = vadd.f32 %v136, 0.0
    %v145 = vadd.f32 %v137, 0.0
    %v146 = vadd.f32 %v138, 0.0
    %v147 = vadd.f32 %v139, 0.0
    %v148 = vadd.f32 %v140, 0.0
    %v149 = vadd.f32 %v141, 0.0
    %v150 = vadd.f32 %v142, 0.0
    %v151 = vadd.f32 %v143, 0.0
    %v152 = vstv %s38
    %v153 = vmul.f32 %v101, %v152
    %v154 = vmul.f32 %v102, %v152
    %v155 = vmul.f32 %v103, %v152
    %v156 = vmul.f32 %v104, %v152
    %v157 = vmul.f32 %v105, %v152
    %v158 = vmul.f32 %v106, %v152
    %v159 = vmul.f32 %v107, %v152
    %v160 = vmul.f32 %v108, %v152
    %v161 = vstv %s58
    %v162 = vadd.f32 %v153, %v161
    %v163 = vadd.f32 %v154, %v161
    %v164 = vadd.f32 %v155, %v161
    %v165 = vadd.f32 %v156, %v161
    %v166 = vadd.f32 %v157, %v161
    %v167 = vadd.f32 %v158, %v161
    %v168 = vadd.f32 %v159, %v161
    %v169 = vadd.f32 %v160, %v161
    %v170 = vmax.f32 %v162, 0.0
    %v171 = vmax.f32 %v163, 0.0
    %v172 = vmax.f32 %v164, 0.0
    %v173 = vmax.f32 %v165, 0.0
    %v174 = vmax.f32 %v166, 0.0
    %v175 = vmax.f32 %v167, 0.0
    %v176 = vmax.f32 %v168, 0.0
    %v177 = vmax.f32 %v169, 0.0
    %v178 = vstv %s78
    %v179 = vmul.f32 %v178, %v170
    %v180 = vmul.f32 %v178, %v171
    %v181 = vmul.f32 %v178, %v172
    %v182 = vmul.f32 %v178, %v173
    %v183 = vmul.f32 %v178, %v174
    %v184 = vmul.f32 %v178, %v175
    %v185 = vmul.f32 %v178, %v176
    %v186 = vmul.f32 %v178, %v177
    %v187 = vadd.f32 %v144, %v179
    %v188 = vadd.f32 %v145, %v180
    %v189 = vadd.f32 %v146, %v181
    %v190 = vadd.f32 %v147, %v182
    %v191 = vadd.f32 %v148, %v183
    %v192 = vadd.f32 %v149, %v184
    %v193 = vadd.f32 %v150, %v185
    %v194 = vadd.f32 %v151, %v186
    %v195 = vstv %s39
    %v196 = vmul.f32 %v101, %v195
    %v197 = vmul.f32 %v102, %v195
    %v198 = vmul.f32 %v103, %v195
    %v199 = vmul.f32 %v104, %v195
    %v200 = vmul.f32 %v105, %v195
    %v201 = vmul.f32 %v106, %v195
    %v202 = vmul.f32 %v107, %v195
    %v203 = vmul.f32 %v108, %v195
    %v204 = vstv %s59
    %v205 = vadd.f32 %v196, %v204
    %v206 = vadd.f32 %v197, %v204
    %v207 = vadd.f32 %v198, %v204
    %v208 = vadd.f32 %v199, %v204
    %v209 = vadd.f32 %v200, %v204
    %v210 = vadd.f32 %v201, %v204
    %v211 = vadd.f32 %v202, %v204
    %v212 = vadd.f32 %v203, %v204
    %v213 = vmax.f32 %v205, 0.0
    %v214 = vmax.f32 %v206, 0.0
    %v215 = vmax.f32 %v207, 0.0
    %v216 = vmax.f32 %v208, 0.0
    %v217 = vmax.f32 %v209, 0.0
    %v218 = vmax.f32 %v210, 0.0
    %v219 = vmax.f32 %v211, 0.0
    %v220 = vmax.f32 %v212, 0.0
    %v221 = vstv %s79
    %v222 = vmul.f32 %v221, %v213
    %v223 = vmul.f32 %v221, %v214
    %v224 = vmul.f32 %v221, %v215
    %v225 = vmul.f32 %v221, %v216
    %v226 = vmul.f32 %v221, %v217
    %v227 = vmul.f32 %v221, %v218
    %v228 = vmul.f32 %v221, %v219
    %v229 = vmul.f32 %v221, %v220
    %v230 = vadd.f32 %v187, %v222
    %v231 = vadd.f32 %v188, %v223
    %v232 = vadd.f32 %v189, %v224
    %v233 = vadd.f32 %v190, %v225
    %v234 = vadd.f32 %v191, %v226
    %v235 = vadd.f32 %v192, %v227
    %v236 = vadd.f32 %v193, %v228
    %v237 = vadd.f32 %v194, %v229
    %v238 = vstv %s40
    %v239 = vmul.f32 %v101, %v238
    %v240 = vmul.f32 %v102, %v238
    %v241 = vmul.f32 %v103, %v238
    %v242 = vmul.f32 %v104, %v238
    %v243 = vmul.f32 %v105, %v238
    %v244 = vmul.f32 %v106, %v238
    %v245 = vmul.f32 %v107, %v238
    %v246 = vmul.f32 %v108, %v238
    %v247 = vstv %s60
    %v248 = vadd.f32 %v239, %v247
    %v249 = vadd.f32 %v240, %v247
    %v250 = vadd.f32 %v241, %v247
    %v251 = vadd.f32 %v242, %v247
    %v252 = vadd.f32 %v243, %v247
    %v253 = vadd.f32 %v244, %v247
    %v254 = vadd.f32 %v245, %v247
    %v255 = vadd.f32 %v246, %v247
    %v256 = vmax.f32 %v248, 0.0
    %v257 = vmax.f32 %v249, 0.0
    %v258 = vmax.f32 %v250, 0.0
    %v259 = vmax.f32 %v251, 0.0
    %v260 = vmax.f32 %v252, 0.0
    %v261 = vmax.f32 %v253, 0.0
    %v262 = vmax.f32 %v254, 0.0
    %v263 = vmax.f32 %v255, 0.0
    %v264 = vstv %s80
    %v265 = vmul.f32 %v264, %v256
    %v266 = vmul.f32 %v264, %v257
    %v267 = vmul.f32 %v264, %v258
    %v268 = vmul.f32 %v264, %v259
    %v269 = vmul.f32 %v264, %v260
    %v270 = vmul.f32 %v264, %v261
    %v271 = vmul.f32 %v264, %v262
    %v272 = vmul.f32 %v264, %v263
    %v273 = vadd.f32 %v230, %v265
    %v274 = vadd.f32 %v231, %v266
    %v275 = vadd.f32 %v232, %v267
    %v276 = vadd.f32 %v233, %v268
    %v277 = vadd.f32 %v234, %v269
    %v278 = vadd.f32 %v235, %v270
    %v279 = vadd.f32 %v236, %v271
    %v280 = vadd.f32 %v237, %v272
    %v281 = vstv %s41
    %v282 = vmul.f32 %v101, %v281
    %v283 = vmul.f32 %v102, %v281
    %v284 = vmul.f32 %v103, %v281
    %v285 = vmul.f32 %v104, %v281
    %v286 = vmul.f32 %v105, %v281
    %v287 = vmul.f32 %v106, %v281
    %v288 = vmul.f32 %v107, %v281
    %v289 = vmul.f32 %v108, %v281
    %v290 = vstv %s61
    %v291 = vadd.f32 %v282, %v290
    %v292 = vadd.f32 %v283, %v290
    %v293 = vadd.f32 %v284, %v290
    %v294 = vadd.f32 %v285, %v290
    %v295 = vadd.f32 %v286, %v290
    %v296 = vadd.f32 %v287, %v290
    %v297 = vadd.f32 %v288, %v290
    %v298 = vadd.f32 %v289, %v290
    %v299 = vmax.f32 %v291, 0.0
    %v300 = vmax.f32 %v292, 0.0
    %v301 = vmax.f32 %v293, 0.0
    %v302 = vmax.f32 %v294, 0.0
    %v303 = vmax.f32 %v295, 0.0
    %v304 = vmax.f32 %v296, 0.0
    %v305 = vmax.f32 %v297, 0.0
    %v306 = vmax.f32 %v298, 0.0
    %v307 = vstv %s81
    %v308 = vmul.f32 %v307, %v299
    %v309 = vmul.f32 %v307, %v300
    %v310 = vmul.f32 %v307, %v301
    %v311 = vmul.f32 %v307, %v302
    %v312 = vmul.f32 %v307, %v303
    %v313 = vmul.f32 %v307, %v304
    %v314 = vmul.f32 %v307, %v305
    %v315 = vmul.f32 %v307, %v306
    %v316 = vadd.f32 %v273, %v308
    %v317 = vadd.f32 %v274, %v309
    %v318 = vadd.f32 %v275, %v310
    %v319 = vadd.f32 %v276, %v311
    %v320 = vadd.f32 %v277, %v312
    %v321 = vadd.f32 %v278, %v313
    %v322 = vadd.f32 %v279, %v314
    %v323 = vadd.f32 %v280, %v315
    %v324 = vstv %s42
    %v325 = vmul.f32 %v101, %v324
    %v326 = vmul.f32 %v102, %v324
    %v327 = vmul.f32 %v103, %v324
    %v328 = vmul.f32 %v104, %v324
    %v329 = vmul.f32 %v105, %v324
    %v330 = vmul.f32 %v106, %v324
    %v331 = vmul.f32 %v107, %v324
    %v332 = vmul.f32 %v108, %v324
    %v333 = vstv %s62
    %v334 = vadd.f32 %v325, %v333
    %v335 = vadd.f32 %v326, %v333
    %v336 = vadd.f32 %v327, %v333
    %v337 = vadd.f32 %v328, %v333
    %v338 = vadd.f32 %v329, %v333
    %v339 = vadd.f32 %v330, %v333
    %v340 = vadd.f32 %v331, %v333
    %v341 = vadd.f32 %v332, %v333
    %v342 = vmax.f32 %v334, 0.0
    %v343 = vmax.f32 %v335, 0.0
    %v344 = vmax.f32 %v336, 0.0
    %v345 = vmax.f32 %v337, 0.0
    %v346 = vmax.f32 %v338, 0.0
    %v347 = vmax.f32 %v339, 0.0
    %v348 = vmax.f32 %v340, 0.0
    %v349 = vmax.f32 %v341, 0.0
    %v350 = vstv %s82
    %v351 = vmul.f32 %v350, %v342
    %v352 = vmul.f32 %v350, %v343
    %v353 = vmul.f32 %v350, %v344
    %v354 = vmul.f32 %v350, %v345
    %v355 = vmul.f32 %v350, %v346
    %v356 = vmul.f32 %v350, %v347
    %v357 = vmul.f32 %v350, %v348
    %v358 = vmul.f32 %v350, %v349
    %v359 = vadd.f32 %v316, %v351
    %v360 = vadd.f32 %v317, %v352
    %v361 = vadd.f32 %v318, %v353
    %v362 = vadd.f32 %v319, %v354
    %v363 = vadd.f32 %v320, %v355
    %v364 = vadd.f32 %v321, %v356
    %v365 = vadd.f32 %v322, %v357
    %v366 = vadd.f32 %v323, %v358
    %v367 = vstv %s43
    %v368 = vmul.f32 %v101, %v367
    %v369 = vmul.f32 %v102, %v367
    %v370 = vmul.f32 %v103, %v367
    %v371 = vmul.f32 %v104, %v367
    %v372 = vmul.f32 %v105, %v367
    %v373 = vmul.f32 %v106, %v367
    %v374 = vmul.f32 %v107, %v367
    %v375 = vmul.f32 %v108, %v367
    %v376 = vstv %s63
    %v377 = vadd.f32 %v368, %v376
    %v378 = vadd.f32 %v369, %v376
    %v379 = vadd.f32 %v370, %v376
    %v380 = vadd.f32 %v371, %v376
    %v381 = vadd.f32 %v372, %v376
    %v382 = vadd.f32 %v373, %v376
    %v383 = vadd.f32 %v374, %v376
    %v384 = vadd.f32 %v375, %v376
    %v385 = vmax.f32 %v377, 0.0
    %v386 = vmax.f32 %v378, 0.0
    %v387 = vmax.f32 %v379, 0.0
    %v388 = vmax.f32 %v380, 0.0
    %v389 = vmax.f32 %v381, 0.0
    %v390 = vmax.f32 %v382, 0.0
    %v391 = vmax.f32 %v383, 0.0
    %v392 = vmax.f32 %v384, 0.0
    %v393 = vstv %s83
    %v394 = vmul.f32 %v393, %v385
    %v395 = vmul.f32 %v393, %v386
    %v396 = vmul.f32 %v393, %v387
    %v397 = vmul.f32 %v393, %v388
    %v398 = vmul.f32 %v393, %v389
    %v399 = vmul.f32 %v393, %v390
    %v400 = vmul.f32 %v393, %v391
    %v401 = vmul.f32 %v393, %v392
    %v402 = vadd.f32 %v359, %v394
    %v403 = vadd.f32 %v360, %v395
    %v404 = vadd.f32 %v361, %v396
    %v405 = vadd.f32 %v362, %v397
    %v406 = vadd.f32 %v363, %v398
    %v407 = vadd.f32 %v364, %v399
    %v408 = vadd.f32 %v365, %v400
    %v409 = vadd.f32 %v366, %v401
    %v410 = vstv %s44
    %v411 = vmul.f32 %v101, %v410
    %v412 = vmul.f32 %v102, %v410
    %v413 = vmul.f32 %v103, %v410
    %v414 = vmul.f32 %v104, %v410
    %v415 = vmul.f32 %v105, %v410
    %v416 = vmul.f32 %v106, %v410
    %v417 = vmul.f32 %v107, %v410
    %v418 = vmul.f32 %v108, %v410
    %v419 = vstv %s64
    %v420 = vadd.f32 %v411, %v419
    %v421 = vadd.f32 %v412, %v419
    %v422 = vadd.f32 %v413, %v419
    %v423 = vadd.f32 %v414, %v419
    %v424 = vadd.f32 %v415, %v419
    %v425 = vadd.f32 %v416, %v419
    %v426 = vadd.f32 %v417, %v419
    %v427 = vadd.f32 %v418, %v419
    %v428 = vmax.f32 %v420, 0.0
    %v429 = vmax.f32 %v421, 0.0
    %v430 = vmax.f32 %v422, 0.0
    %v431 = vmax.f32 %v423, 0.0
    %v432 = vmax.f32 %v424, 0.0
    %v433 = vmax.f32 %v425, 0.0
    %v434 = vmax.f32 %v426, 0.0
    %v435 = vmax.f32 %v427, 0.0
    %v436 = vstv %s84
    %v437 = vmul.f32 %v436, %v428
    %v438 = vmul.f32 %v436, %v429
    %v439 = vmul.f32 %v436, %v430
    %v440 = vmul.f32 %v436, %v431
    %v441 = vmul.f32 %v436, %v432
    %v442 = vmul.f32 %v436, %v433
    %v443 = vmul.f32 %v436, %v434
    %v444 = vmul.f32 %v436, %v435
    %v445 = vadd.f32 %v402, %v437
    %v446 = vadd.f32 %v403, %v438
    %v447 = vadd.f32 %v404, %v439
    %v448 = vadd.f32 %v405, %v440
    %v449 = vadd.f32 %v406, %v441
    %v450 = vadd.f32 %v407, %v442
    %v451 = vadd.f32 %v408, %v443
    %v452 = vadd.f32 %v409, %v444
    %v453 = vstv %s45
    %v454 = vmul.f32 %v101, %v453
    %v455 = vmul.f32 %v102, %v453
    %v456 = vmul.f32 %v103, %v453
    %v457 = vmul.f32 %v104, %v453
    %v458 = vmul.f32 %v105, %v453
    %v459 = vmul.f32 %v106, %v453
    %v460 = vmul.f32 %v107, %v453
    %v461 = vmul.f32 %v108, %v453
    %v462 = vstv %s65
    %v463 = vadd.f32 %v454, %v462
    %v464 = vadd.f32 %v455, %v462
    %v465 = vadd.f32 %v456, %v462
    %v466 = vadd.f32 %v457, %v462
    %v467 = vadd.f32 %v458, %v462
    %v468 = vadd.f32 %v459, %v462
    %v469 = vadd.f32 %v460, %v462
    %v470 = vadd.f32 %v461, %v462
    %v471 = vmax.f32 %v463, 0.0
    %v472 = vmax.f32 %v464, 0.0
    %v473 = vmax.f32 %v465, 0.0
    %v474 = vmax.f32 %v466, 0.0
    %v475 = vmax.f32 %v467, 0.0
    %v476 = vmax.f32 %v468, 0.0
    %v477 = vmax.f32 %v469, 0.0
    %v478 = vmax.f32 %v470, 0.0
    %v479 = vstv %s85
    %v480 = vmul.f32 %v479, %v471
    %v481 = vmul.f32 %v479, %v472
    %v482 = vmul.f32 %v479, %v473
    %v483 = vmul.f32 %v479, %v474
    %v484 = vmul.f32 %v479, %v475
    %v485 = vmul.f32 %v479, %v476
    %v486 = vmul.f32 %v479, %v477
    %v487 = vmul.f32 %v479, %v478
    %v488 = vadd.f32 %v445, %v480
    %v489 = vadd.f32 %v446, %v481
    %v490 = vadd.f32 %v447, %v482
    %v491 = vadd.f32 %v448, %v483
    %v492 = vadd.f32 %v449, %v484
    %v493 = vadd.f32 %v450, %v485
    %v494 = vadd.f32 %v451, %v486
    %v495 = vadd.f32 %v452, %v487
    %v496 = vstv %s46
    %v497 = vmul.f32 %v101, %v496
    %v498 = vmul.f32 %v102, %v496
    %v499 = vmul.f32 %v103, %v496
    %v500 = vmul.f32 %v104, %v496
    %v501 = vmul.f32 %v105, %v496
    %v502 = vmul.f32 %v106, %v496
    %v503 = vmul.f32 %v107, %v496
    %v504 = vmul.f32 %v108, %v496
    %v505 = vstv %s66
    %v506 = vadd.f32 %v497, %v505
    %v507 = vadd.f32 %v498, %v505
    %v508 = vadd.f32 %v499, %v505
    %v509 = vadd.f32 %v500, %v505
    %v510 = vadd.f32 %v501, %v505
    %v511 = vadd.f32 %v502, %v505
    %v512 = vadd.f32 %v503, %v505
    %v513 = vadd.f32 %v504, %v505
    %v514 = vmax.f32 %v506, 0.0
    %v515 = vmax.f32 %v507, 0.0
    %v516 = vmax.f32 %v508, 0.0
    %v517 = vmax.f32 %v509, 0.0
    %v518 = vmax.f32 %v510, 0.0
    %v519 = vmax.f32 %v511, 0.0
    %v520 = vmax.f32 %v512, 0.0
    %v521 = vmax.f32 %v513, 0.0
    %v522 = vstv %s86
    %v523 = vmul.f32 %v522, %v514
    %v524 = vmul.f32 %v522, %v515
    %v525 = vmul.f32 %v522, %v516
    %v526 = vmul.f32 %v522, %v517
    %v527 = vmul.f32 %v522, %v518
    %v528 = vmul.f32 %v522, %v519
    %v529 = vmul.f32 %v522, %v520
    %v530 = vmul.f32 %v522, %v521
    %v531 = vadd.f32 %v488, %v523
    %v532 = vadd.f32 %v489, %v524
    %v533 = vadd.f32 %v490, %v525
    %v534 = vadd.f32 %v491, %v526
    %v535 = vadd.f32 %v492, %v527
    %v536 = vadd.f32 %v493, %v528
    %v537 = vadd.f32 %v494, %v529
    %v538 = vadd.f32 %v495, %v530
    %v539 = vstv %s47
    %v540 = vmul.f32 %v101, %v539
    %v541 = vmul.f32 %v102, %v539
    %v542 = vmul.f32 %v103, %v539
    %v543 = vmul.f32 %v104, %v539
    %v544 = vmul.f32 %v105, %v539
    %v545 = vmul.f32 %v106, %v539
    %v546 = vmul.f32 %v107, %v539
    %v547 = vmul.f32 %v108, %v539
    %v548 = vstv %s67
    %v549 = vadd.f32 %v540, %v548
    %v550 = vadd.f32 %v541, %v548
    %v551 = vadd.f32 %v542, %v548
    %v552 = vadd.f32 %v543, %v548
    %v553 = vadd.f32 %v544, %v548
    %v554 = vadd.f32 %v545, %v548
    %v555 = vadd.f32 %v546, %v548
    %v556 = vadd.f32 %v547, %v548
    %v557 = vmax.f32 %v549, 0.0
    %v558 = vmax.f32 %v550, 0.0
    %v559 = vmax.f32 %v551, 0.0
    %v560 = vmax.f32 %v552, 0.0
    %v561 = vmax.f32 %v553, 0.0
    %v562 = vmax.f32 %v554, 0.0
    %v563 = vmax.f32 %v555, 0.0
    %v564 = vmax.f32 %v556, 0.0
    %v565 = vstv %s87
    %v566 = vmul.f32 %v565, %v557
    %v567 = vmul.f32 %v565, %v558
    %v568 = vmul.f32 %v565, %v559
    %v569 = vmul.f32 %v565, %v560
    %v570 = vmul.f32 %v565, %v561
    %v571 = vmul.f32 %v565, %v562
    %v572 = vmul.f32 %v565, %v563
    %v573 = vmul.f32 %v565, %v564
    %v574 = vadd.f32 %v566, 0.0
    %v575 = vadd.f32 %v567, 0.0
    %v576 = vadd.f32 %v568, 0.0
    %v577 = vadd.f32 %v569, 0.0
    %v578 = vadd.f32 %v570, 0.0
    %v579 = vadd.f32 %v571, 0.0
    %v580 = vadd.f32 %v572, 0.0
    %v581 = vadd.f32 %v573, 0.0
    %v582 = vstv %s48
    %v583 = vmul.f32 %v101, %v582
    %v584 = vmul.f32 %v102, %v582
    %v585 = vmul.f32 %v103, %v582
    %v586 = vmul.f32 %v104, %v582
    %v587 = vmul.f32 %v105, %v582
    %v588 = vmul.f32 %v106, %v582
    %v589 = vmul.f32 %v107, %v582
    %v590 = vmul.f32 %v108, %v582
    %v591 = vstv %s68
    %v592 = vadd.f32 %v583, %v591
    %v593 = vadd.f32 %v584, %v591
    %v594 = vadd.f32 %v585, %v591
    %v595 = vadd.f32 %v586, %v591
    %v596 = vadd.f32 %v587, %v591
    %v597 = vadd.f32 %v588, %v591
    %v598 = vadd.f32 %v589, %v591
    %v599 = vadd.f32 %v590, %v591
    %v600 = vmax.f32 %v592, 0.0
    %v601 = vmax.f32 %v593, 0.0
    %v602 = vmax.f32 %v594, 0.0
    %v603 = vmax.f32 %v595, 0.0
    %v604 = vmax.f32 %v596, 0.0
    %v605 = vmax.f32 %v597, 0.0
    %v606 = vmax.f32 %v598, 0.0
    %v607 = vmax.f32 %v599, 0.0
    %v608 = vstv %s88
    %v609 = vmul.f32 %v608, %v600
    %v610 = vmul.f32 %v608, %v601
    %v611 = vmul.f32 %v608, %v602
    %v612 = vmul.f32 %v608, %v603
    %v613 = vmul.f32 %v608, %v604
    %v614 = vmul.f32 %v608, %v605
    %v615 = vmul.f32 %v608, %v606
    %v616 = vmul.f32 %v608, %v607
    %v617 = vadd.f32 %v574, %v609
    %v618 = vadd.f32 %v575, %v610
    %v619 = vadd.f32 %v576, %v611
    %v620 = vadd.f32 %v577, %v612
    %v621 = vadd.f32 %v578, %v613
    %v622 = vadd.f32 %v579, %v614
    %v623 = vadd.f32 %v580, %v615
    %v624 = vadd.f32 %v581, %v616
    %v625 = vstv %s49
    %v626 = vmul.f32 %v101, %v625
    %v627 = vmul.f32 %v102, %v625
    %v628 = vmul.f32 %v103, %v625
    %v629 = vmul.f32 %v104, %v625
    %v630 = vmul.f32 %v105, %v625
    %v631 = vmul.f32 %v106, %v625
    %v632 = vmul.f32 %v107, %v625
    %v633 = vmul.f32 %v108, %v625
    %v634 = vstv %s69
    %v635 = vadd.f32 %v626, %v634
    %v636 = vadd.f32 %v627, %v634
    %v637 = vadd.f32 %v628, %v634
    %v638 = vadd.f32 %v629, %v634
    %v639 = vadd.f32 %v630, %v634
    %v640 = vadd.f32 %v631, %v634
    %v641 = vadd.f32 %v632, %v634
    %v642 = vadd.f32 %v633, %v634
    %v643 = vmax.f32 %v635, 0.0
    %v644 = vmax.f32 %v636, 0.0
    %v645 = vmax.f32 %v637, 0.0
    %v646 = vmax.f32 %v638, 0.0
    %v647 = vmax.f32 %v639, 0.0
    %v648 = vmax.f32 %v640, 0.0
    %v649 = vmax.f32 %v641, 0.0
    %v650 = vmax.f32 %v642, 0.0
    %v651 = vstv %s89
    %v652 = vmul.f32 %v651, %v643
    %v653 = vmul.f32 %v651, %v644
    %v654 = vmul.f32 %v651, %v645
    %v655 = vmul.f32 %v651, %v646
    %v656 = vmul.f32 %v651, %v647
    %v657 = vmul.f32 %v651, %v648
    %v658 = vmul.f32 %v651, %v649
    %v659 = vmul.f32 %v651, %v650
    %v660 = vadd.f32 %v617, %v652
    %v661 = vadd.f32 %v618, %v653
    %v662 = vadd.f32 %v619, %v654
    %v663 = vadd.f32 %v620, %v655
    %v664 = vadd.f32 %v621, %v656
    %v665 = vadd.f32 %v622, %v657
    %v666 = vadd.f32 %v623, %v658
    %v667 = vadd.f32 %v624, %v659
    %v668 = vstv %s50
    %v669 = vmul.f32 %v101, %v668
    %v670 = vmul.f32 %v102, %v668
    %v671 = vmul.f32 %v103, %v668
    %v672 = vmul.f32 %v104, %v668
    %v673 = vmul.f32 %v105, %v668
    %v674 = vmul.f32 %v106, %v668
    %v675 = vmul.f32 %v107, %v668
    %v676 = vmul.f32 %v108, %v668
    %v677 = vstv %s70
    %v678 = vadd.f32 %v669, %v677
    %v679 = vadd.f32 %v670, %v677
    %v680 = vadd.f32 %v671, %v677
    %v681 = vadd.f32 %v672, %v677
    %v682 = vadd.f32 %v673, %v677
    %v683 = vadd.f32 %v674, %v677
    %v684 = vadd.f32 %v675, %v677
    %v685 = vadd.f32 %v676, %v677
    %v686 = vmax.f32 %v678, 0.0
    %v687 = vmax.f32 %v679, 0.0
    %v688 = vmax.f32 %v680, 0.0
    %v689 = vmax.f32 %v681, 0.0
    %v690 = vmax.f32 %v682, 0.0
    %v691 = vmax.f32 %v683, 0.0
    %v692 = vmax.f32 %v684, 0.0
    %v693 = vmax.f32 %v685, 0.0
    %v694 = vstv %s90
    %v695 = vmul.f32 %v694, %v686
    %v696 = vmul.f32 %v694, %v687
    %v697 = vmul.f32 %v694, %v688
    %v698 = vmul.f32 %v694, %v689
    %v699 = vmul.f32 %v694, %v690
    %v700 = vmul.f32 %v694, %v691
    %v701 = vmul.f32 %v694, %v692
    %v702 = vmul.f32 %v694, %v693
    %v703 = vadd.f32 %v660, %v695
    %v704 = vadd.f32 %v661, %v696
    %v705 = vadd.f32 %v662, %v697
    %v706 = vadd.f32 %v663, %v698
    %v707 = vadd.f32 %v664, %v699
    %v708 = vadd.f32 %v665, %v700
    %v709 = vadd.f32 %v666, %v701
    %v710 = vadd.f32 %v667, %v702
    %v711 = vstv %s51
    %v712 = vmul.f32 %v101, %v711
    %v713 = vmul.f32 %v102, %v711
    %v714 = vmul.f32 %v103, %v711
    %v715 = vmul.f32 %v104, %v711
    %v716 = vmul.f32 %v105, %v711
    %v717 = vmul.f32 %v106, %v711
    %v718 = vmul.f32 %v107, %v711
    %v719 = vmul.f32 %v108, %v711
    %v720 = vstv %s71
    %v721 = vadd.f32 %v712, %v720
    %v722 = vadd.f32 %v713, %v720
    %v723 = vadd.f32 %v714, %v720
    %v724 = vadd.f32 %v715, %v720
    %v725 = vadd.f32 %v716, %v720
    %v726 = vadd.f32 %v717, %v720
    %v727 = vadd.f32 %v718, %v720
    %v728 = vadd.f32 %v719, %v720
    %v729 = vmax.f32 %v721, 0.0
    %v730 = vmax.f32 %v722, 0.0
    %v731 = vmax.f32 %v723, 0.0
    %v732 = vmax.f32 %v724, 0.0
    %v733 = vmax.f32 %v725, 0.0
    %v734 = vmax.f32 %v726, 0.0
    %v735 = vmax.f32 %v727, 0.0
    %v736 = vmax.f32 %v728, 0.0
    %v737 = vstv %s91
    %v738 = vmul.f32 %v737, %v729
    %v739 = vmul.f32 %v737, %v730
    %v740 = vmul.f32 %v737, %v731
    %v741 = vmul.f32 %v737, %v732
    %v742 = vmul.f32 %v737, %v733
    %v743 = vmul.f32 %v737, %v734
    %v744 = vmul.f32 %v737, %v735
    %v745 = vmul.f32 %v737, %v736
    %v746 = vadd.f32 %v703, %v738
    %v747 = vadd.f32 %v704, %v739
    %v748 = vadd.f32 %v705, %v740
    %v749 = vadd.f32 %v706, %v741
    %v750 = vadd.f32 %v707, %v742
    %v751 = vadd.f32 %v708, %v743
    %v752 = vadd.f32 %v709, %v744
    %v753 = vadd.f32 %v710, %v745
    %v754 = vstv %s52
    %v755 = vmul.f32 %v101, %v754
    %v756 = vmul.f32 %v102, %v754
    %v757 = vmul.f32 %v103, %v754
    %v758 = vmul.f32 %v104, %v754
    %v759 = vmul.f32 %v105, %v754
    %v760 = vmul.f32 %v106, %v754
    %v761 = vmul.f32 %v107, %v754
    %v762 = vmul.f32 %v108, %v754
    %v763 = vstv %s72
    %v764 = vadd.f32 %v755, %v763
    %v765 = vadd.f32 %v756, %v763
    %v766 = vadd.f32 %v757, %v763
    %v767 = vadd.f32 %v758, %v763
    %v768 = vadd.f32 %v759, %v763
    %v769 = vadd.f32 %v760, %v763
    %v770 = vadd.f32 %v761, %v763
    %v771 = vadd.f32 %v762, %v763
    %v772 = vmax.f32 %v764, 0.0
    %v773 = vmax.f32 %v765, 0.0
    %v774 = vmax.f32 %v766, 0.0
    %v775 = vmax.f32 %v767, 0.0
    %v776 = vmax.f32 %v768, 0.0
    %v777 = vmax.f32 %v769, 0.0
    %v778 = vmax.f32 %v770, 0.0
    %v779 = vmax.f32 %v771, 0.0
    %v780 = vstv %s92
    %v781 = vmul.f32 %v780, %v772
    %v782 = vmul.f32 %v780, %v773
    %v783 = vmul.f32 %v780, %v774
    %v784 = vmul.f32 %v780, %v775
    %v785 = vmul.f32 %v780, %v776
    %v786 = vmul.f32 %v780, %v777
    %v787 = vmul.f32 %v780, %v778
    %v788 = vmul.f32 %v780, %v779
    %v789 = vadd.f32 %v746, %v781
    %v790 = vadd.f32 %v747, %v782
    %v791 = vadd.f32 %v748, %v783
    %v792 = vadd.f32 %v749, %v784
    %v793 = vadd.f32 %v750, %v785
    %v794 = vadd.f32 %v751, %v786
    %v795 = vadd.f32 %v752, %v787
    %v796 = vadd.f32 %v753, %v788
    %v797 = vstv %s53
    %v798 = vmul.f32 %v101, %v797
    %v799 = vmul.f32 %v102, %v797
    %v800 = vmul.f32 %v103, %v797
    %v801 = vmul.f32 %v104, %v797
    %v802 = vmul.f32 %v105, %v797
    %v803 = vmul.f32 %v106, %v797
    %v804 = vmul.f32 %v107, %v797
    %v805 = vmul.f32 %v108, %v797
    %v806 = vstv %s73
    %v807 = vadd.f32 %v798, %v806
    %v808 = vadd.f32 %v799, %v806
    %v809 = vadd.f32 %v800, %v806
    %v810 = vadd.f32 %v801, %v806
    %v811 = vadd.f32 %v802, %v806
    %v812 = vadd.f32 %v803, %v806
    %v813 = vadd.f32 %v804, %v806
    %v814 = vadd.f32 %v805, %v806
    %v815 = vmax.f32 %v807, 0.0
    %v816 = vmax.f32 %v808, 0.0
    %v817 = vmax.f32 %v809, 0.0
    %v818 = vmax.f32 %v810, 0.0
    %v819 = vmax.f32 %v811, 0.0
    %v820 = vmax.f32 %v812, 0.0
    %v821 = vmax.f32 %v813, 0.0
    %v822 = vmax.f32 %v814, 0.0
    %v823 = vstv %s93
    %v824 = vmul.f32 %v823, %v815
    %v825 = vmul.f32 %v823, %v816
    %v826 = vmul.f32 %v823, %v817
    %v827 = vmul.f32 %v823, %v818
    %v828 = vmul.f32 %v823, %v819
    %v829 = vmul.f32 %v823, %v820
    %v830 = vmul.f32 %v823, %v821
    %v831 = vmul.f32 %v823, %v822
    %v832 = vadd.f32 %v789, %v824
    %v833 = vadd.f32 %v790, %v825
    %v834 = vadd.f32 %v791, %v826
    %v835 = vadd.f32 %v792, %v827
    %v836 = vadd.f32 %v793, %v828
    %v837 = vadd.f32 %v794, %v829
    %v838 = vadd.f32 %v795, %v830
    %v839 = vadd.f32 %v796, %v831
    %v840 = vstv %s54
    %v841 = vmul.f32 %v101, %v840
    %v842 = vmul.f32 %v102, %v840
    %v843 = vmul.f32 %v103, %v840
    %v844 = vmul.f32 %v104, %v840
    %v845 = vmul.f32 %v105, %v840
    %v846 = vmul.f32 %v106, %v840
    %v847 = vmul.f32 %v107, %v840
    %v848 = vmul.f32 %v108, %v840
    %v849 = vstv %s74
    %v850 = vadd.f32 %v841, %v849
    %v851 = vadd.f32 %v842, %v849
    %v852 = vadd.f32 %v843, %v849
    %v853 = vadd.f32 %v844, %v849
    %v854 = vadd.f32 %v845, %v849
    %v855 = vadd.f32 %v846, %v849
    %v856 = vadd.f32 %v847, %v849
    %v857 = vadd.f32 %v848, %v849
    %v858 = vmax.f32 %v850, 0.0
    %v859 = vmax.f32 %v851, 0.0
    %v860 = vmax.f32 %v852, 0.0
    %v861 = vmax.f32 %v853, 0.0
    %v862 = vmax.f32 %v854, 0.0
    %v863 = vmax.f32 %v855, 0.0
    %v864 = vmax.f32 %v856, 0.0
    %v865 = vmax.f32 %v857, 0.0
    %v866 = vstv %s94
    %v867 = vmul.f32 %v866, %v858
    %v868 = vmul.f32 %v866, %v859
    %v869 = vmul.f32 %v866, %v860
    %v870 = vmul.f32 %v866, %v861
    %v871 = vmul.f32 %v866, %v862
    %v872 = vmul.f32 %v866, %v863
    %v873 = vmul.f32 %v866, %v864
    %v874 = vmul.f32 %v866, %v865
    %v875 = vadd.f32 %v832, %v867
    %v876 = vadd.f32 %v833, %v868
    %v877 = vadd.f32 %v834, %v869
    %v878 = vadd.f32 %v835, %v870
    %v879 = vadd.f32 %v836, %v871
    %v880 = vadd.f32 %v837, %v872
    %v881 = vadd.f32 %v838, %v873
    %v882 = vadd.f32 %v839, %v874
    %v883 = vstv %s55
    %v884 = vmul.f32 %v101, %v883
    %v885 = vmul.f32 %v102, %v883
    %v886 = vmul.f32 %v103, %v883
    %v887 = vmul.f32 %v104, %v883
    %v888 = vmul.f32 %v105, %v883
    %v889 = vmul.f32 %v106, %v883
    %v890 = vmul.f32 %v107, %v883
    %v891 = vmul.f32 %v108, %v883
    %v892 = vstv %s75
    %v893 = vadd.f32 %v884, %v892
    %v894 = vadd.f32 %v885, %v892
    %v895 = vadd.f32 %v886, %v892
    %v896 = vadd.f32 %v887, %v892
    %v897 = vadd.f32 %v888, %v892
    %v898 = vadd.f32 %v889, %v892
    %v899 = vadd.f32 %v890, %v892
    %v900 = vadd.f32 %v891, %v892
    %v901 = vmax.f32 %v893, 0.0
    %v902 = vmax.f32 %v894, 0.0
    %v903 = vmax.f32 %v895, 0.0
    %v904 = vmax.f32 %v896, 0.0
    %v905 = vmax.f32 %v897, 0.0
    %v906 = vmax.f32 %v898, 0.0
    %v907 = vmax.f32 %v899, 0.0
    %v908 = vmax.f32 %v900, 0.0
    %v909 = vstv %s95
    %v910 = vmul.f32 %v909, %v901
    %v911 = vmul.f32 %v909, %v902
    %v912 = vmul.f32 %v909, %v903
    %v913 = vmul.f32 %v909, %v904
    %v914 = vmul.f32 %v909, %v905
    %v915 = vmul.f32 %v909, %v906
    %v916 = vmul.f32 %v909, %v907
    %v917 = vmul.f32 %v909, %v908
    %v918 = vadd.f32 %v875, %v910
    %v919 = vadd.f32 %v876, %v911
    %v920 = vadd.f32 %v877, %v912
    %v921 = vadd.f32 %v878, %v913
    %v922 = vadd.f32 %v879, %v914
    %v923 = vadd.f32 %v880, %v915
    %v924 = vadd.f32 %v881, %v916
    %v925 = vadd.f32 %v882, %v917
    %v926 = vstv %s56
    %v927 = vmul.f32 %v101, %v926
    %v928 = vmul.f32 %v102, %v926
    %v929 = vmul.f32 %v103, %v926
    %v930 = vmul.f32 %v104, %v926
    %v931 = vmul.f32 %v105, %v926
    %v932 = vmul.f32 %v106, %v926
    %v933 = vmul.f32 %v107, %v926
    %v934 = vmul.f32 %v108, %v926
    %v935 = vstv %s76
    %v936 = vadd.f32 %v927, %v935
    %v937 = vadd.f32 %v928, %v935
    %v938 = vadd.f32 %v929, %v935
    %v939 = vadd.f32 %v930, %v935
    %v940 = vadd.f32 %v931, %v935
    %v941 = vadd.f32 %v932, %v935
    %v942 = vadd.f32 %v933, %v935
    %v943 = vadd.f32 %v934, %v935
    %v944 = vmax.f32 %v936, 0.0
    %v945 = vmax.f32 %v937, 0.0
    %v946 = vmax.f32 %v938, 0.0
    %v947 = vmax.f32 %v939, 0.0
    %v948 = vmax.f32 %v940, 0.0
    %v949 = vmax.f32 %v941, 0.0
    %v950 = vmax.f32 %v942, 0.0
    %v951 = vmax.f32 %v943, 0.0
    %v952 = vstv %s96
    %v953 = vmul.f32 %v952, %v944
    %v954 = vmul.f32 %v952, %v945
    %v955 = vmul.f32 %v952, %v946
    %v956 = vmul.f32 %v952, %v947
    %v957 = vmul.f32 %v952, %v948
    %v958 = vmul.f32 %v952, %v949
    %v959 = vmul.f32 %v952, %v950
    %v960 = vmul.f32 %v952, %v951
    %v961 = vadd.f32 %v918, %v953
    %v962 = vadd.f32 %v919, %v954
    %v963 = vadd.f32 %v920, %v955
    %v964 = vadd.f32 %v921, %v956
    %v965 = vadd.f32 %v922, %v957
    %v966 = vadd.f32 %v923, %v958
    %v967 = vadd.f32 %v924, %v959
    %v968 = vadd.f32 %v925, %v960
    %v969 = vadd.f32 %v531, %v961
    %v970 = vadd.f32 %v532, %v962
    %v971 = vadd.f32 %v533, %v963
    %v972 = vadd.f32 %v534, %v964
    %v973 = vadd.f32 %v535, %v965
    %v974 = vadd.f32 %v536, %v966
    %v975 = vadd.f32 %v537, %v967
    %v976 = vadd.f32 %v538, %v968
    %v977 = vstv %s97
    %v978 = vadd.f32 %v969, %v977
    %v979 = vadd.f32 %v970, %v977
    %v980 = vadd.f32 %v971, %v977
    %v981 = vadd.f32 %v972, %v977
    %v982 = vadd.f32 %v973, %v977
    %v983 = vadd.f32 %v974, %v977
    %v984 = vadd.f32 %v975, %v977
    %v985 = vadd.f32 %v976, %v977
    %s986 = smul.addr %s98, 8
    %s987 = scalar_lea.vmem [#allocation7], %s986
    %988 = vst [vmem:[%s987] sm:$0xff] %v978
    %989 = vst [vmem:[%s987 + $0x8] sm:$0xff] %v979
    %990 = vst [vmem:[%s987 + $0x10] sm:$0xff] %v980
    %991 = vst [vmem:[%s987 + $0x18] sm:$0xff] %v981
    %992 = vst [vmem:[%s987 + $0x20] sm:$0xff] %v982
    %993 = vst [vmem:[%s987 + $0x28] sm:$0xff] %v983
    %994 = vst [vmem:[%s987 + $0x30] sm:$0xff] %v984
    %995 = vst [vmem:[%s987 + $0x38] sm:$0xff] %v985
    // Predicated region
    $region18: #{tpu_custom_call.1} parent=1 // pred_check
      _
    $region19: #{tpu_custom_call.1} parent=1 // pred_check_branch
      %997 = sbr.rel (0) target = $region21
    $region20: #{tpu_custom_call.1} parent=1 // pred_region
      %s999 = ssub.s32 1024, 1024
      %1000 = vsyncadd [#allocation4], %s999
      %s1001 = sshll.u32 [#allocation7], 4
      %s1002 = int_to_ptr.vmem [resolvable:$true] %s1001
      %1007 = dma.vmem_to_hbm [thread:$0]  %s1002, 1024, %s2, [#allocation4], 512, 512, 32
    $region21: #{tpu_custom_call.1} parent=1 // pred_fallthru
      _
    // Predicated region
    $region22: #{tpu_custom_call.1} parent=1 // pred_check
      _
    $region23: #{tpu_custom_call.1} parent=1 // pred_check_branch
      %1009 = sbr.rel (0) target = $region25
    $region24: #{tpu_custom_call.1} parent=1 // pred_region
      %1010 = dma.done [#allocation4], 1024
    $region25: #{tpu_custom_call.1} parent=1 // pred_fallthru
      _
    %1011 = vsyncpa [#allocation3], 1
    %1012 = vsyncpa [#allocation4], 1
    %1013 = vsyncpa [#allocation5], 1

</llo_original>
